<compile_context>
chip_gen: v6e
topology: v6e:2x2x1
jax: 0.10.0
libtpu: 0.0.40
codegen_flags: <defaults>
</compile_context>

<pallas_src>
import jax
import jax.numpy as jnp
from jax import lax
from jax.experimental import pallas as pl
from jax.experimental.pallas import tpu as pltpu


def _cond_linear_kernel(x_ref, wt_ref, b_ref, e_ref, t_ref, o_ref):
    # x_ref : (tb, num_in)        input tile
    # wt_ref: (num_in, tn)        weight tile (already transposed)
    # b_ref : (1, tn)             bias tile (f32)
    # e_ref : (n_steps, tn)       embedding table tile (VMEM resident across i)
    # t_ref : (tb, 1) int32       timestep indices for this batch tile
    # o_ref : (tb, tn)            output tile
    acc = jnp.dot(x_ref[...], wt_ref[...], preferred_element_type=jnp.float32)

    # In-kernel embedding gather as a one-hot MXU matmul (n_steps is tiny).
    tb = t_ref.shape[0]
    n_steps = e_ref.shape[0]
    steps = lax.broadcasted_iota(jnp.int32, (tb, n_steps), 1)
    onehot = (t_ref[...] == steps).astype(e_ref.dtype)
    gamma = jnp.dot(onehot, e_ref[...], preferred_element_type=jnp.float32)

    # f32 epilogue: bias add then per-row gating multiply.
    out = (acc + b_ref[...].astype(jnp.float32)) * gamma
    o_ref[...] = out.astype(o_ref.dtype)


def _round_up(a, m):
    return (a + m - 1) // m * m


def conditional_linear(x, t, wt, b, embed_w, *, tb=None, tn=None,
                       compute_dtype=None):
    """Pallas ConditionalLinear forward.

    x:        (B, num_in)
    t:        (B,) int            timestep indices
    wt:       (num_in, num_out)   Linear weight ALREADY transposed (do W.T once
                                  at parameter-load time, not per call)
    b:        (num_out,)
    embed_w:  (n_steps, num_out)
    tb:       batch tile (auto: min(512, B rounded up to 8))
    tn:       num_out tile (auto: min(512, num_out rounded up to 128))
    compute_dtype: e.g. jnp.bfloat16 to halve HBM traffic for x / W / embed /
                   output; accumulation + epilogue stay f32.
    returns:  (B, num_out) in compute_dtype (or x.dtype if None)
    """
    B, num_in = x.shape
    num_in_w, num_out = wt.shape
    assert num_in_w == num_in, "wt must be (num_in, num_out)"
    n_steps = embed_w.shape[0]

    out_dtype = compute_dtype if compute_dtype is not None else x.dtype
    if compute_dtype is not None:
        x = x.astype(compute_dtype)
        wt = wt.astype(compute_dtype)
        embed_w = embed_w.astype(compute_dtype)
    b2 = b.reshape(1, num_out).astype(jnp.float32)

    # --- tile selection (lane-dense output, 8-row-aligned batch tiles) ---
    if tb is None:
        tb = min(512, _round_up(B, 8))
    tb = max(8, _round_up(tb, 8))
    if tn is None:
        tn = min(512, _round_up(num_out, 128))
    tn = max(128, _round_up(tn, 128))

    B_pad = _round_up(B, tb)
    N_pad = _round_up(num_out, tn)

    # --- wrapper-side padding (keeps kernel tiles full / lane-dense) ---
    if B_pad != B:
        x = jnp.pad(x, ((0, B_pad - B), (0, 0)))
        t = jnp.pad(t, (0, B_pad - B))           # index 0 is valid; rows sliced off
    if N_pad != num_out:
        wt = jnp.pad(wt, ((0, 0), (0, N_pad - num_out)))
        b2 = jnp.pad(b2, ((0, 0), (0, N_pad - num_out)))
        embed_w = jnp.pad(embed_w, ((0, 0), (0, N_pad - num_out)))
    t2 = t.astype(jnp.int32).reshape(B_pad, 1)

    grid = (B_pad // tb, N_pad // tn)

    # Rough VMEM footprint; raise the scoped limit (with headroom, capped below
    # v7x's 64 MiB physical) only when the default would be tight.
    itemsize = jnp.dtype(x.dtype).itemsize
    est = (2 * (tb * num_in + tb * tn) * itemsize     # x / out tiles (dbl-buffered)
           + 2 * tb * 4                                # t tile
           + 2 * (num_in * tn + n_steps * tn) * itemsize
           + 2 * tn * 4
           + tb * tn * 4)                              # f32 epilogue temporaries
    compiler_kwargs = {}
    if est > 24 * 1024 * 1024:
        compiler_kwargs["vmem_limit_bytes"] = int(min(1.5 * est, 60 * 1024 * 1024))

    out = pl.pallas_call(
        _cond_linear_kernel,
        out_shape=jax.ShapeDtypeStruct((B_pad, N_pad), out_dtype),
        grid_spec=pltpu.PrefetchScalarGridSpec(
            num_scalar_prefetch=0,
            grid=grid,
            in_specs=[
                pl.BlockSpec((tb, num_in), lambda i, j: (i, 0)),     # x tile
                pl.BlockSpec((num_in, tn), lambda i, j: (0, j)),     # W^T tile
                pl.BlockSpec((1, tn), lambda i, j: (0, j)),          # bias
                pl.BlockSpec((n_steps, tn), lambda i, j: (0, j)),    # embed table
                pl.BlockSpec((tb, 1), lambda i, j: (i, 0)),          # t indices
            ],
            out_specs=pl.BlockSpec((tb, tn), lambda i, j: (i, j)),
        ),
        compiler_params=pltpu.CompilerParams(
            dimension_semantics=("parallel", "parallel"),
            **compiler_kwargs,
        ),
    )(x, wt, b2, embed_w, t2)

    if B_pad != B or N_pad != num_out:
        out = out[:B, :num_out]
    return out


def _reference(x, t, wt, b, embed_w):
    return embed_w[t] * (x @ wt + b)


if __name__ == "__main__":
    # Small shapes consistent with the module.
    B, num_in, num_out, n_steps = 8, 32, 128, 10

    key = jax.random.PRNGKey(0)
    k_x, k_t, k_w, k_b, k_e = jax.random.split(key, 5)

    x = jax.random.normal(k_x, (B, num_in), dtype=jnp.float32)
    t = jax.random.randint(k_t, (B,), 0, n_steps, dtype=jnp.int32)

    # nn.Linear default init + uniform_ embedding; weight transposed ONCE here
    # (parameter-load time), the forward never transposes.
    bound = 1.0 / (num_in ** 0.5)
    w = jax.random.uniform(k_w, (num_out, num_in), jnp.float32, -bound, bound)
    wt = w.T                                   # (num_in, num_out)
    b = jax.random.uniform(k_b, (num_out,), jnp.float32, -bound, bound)
    embed_w = jax.random.uniform(k_e, (n_steps, num_out), jnp.float32, 0.0, 1.0)

    ref = _reference(x, t, wt, b, embed_w)

    # f32 path (single grid point at this toy size).
    out = jax.block_until_ready(conditional_linear(x, t, wt, b, embed_w))
    assert out.shape == (B, num_out)
    assert jnp.allclose(out, ref, atol=1e-5, rtol=1e-5), "f32 mismatch vs reference"

    # Odd batch size exercises the padding path (no B % tb restriction).
    B2 = 13
    x2 = jax.random.normal(k_x, (B2, num_in), dtype=jnp.float32)
    t2 = jax.random.randint(k_t, (B2,), 0, n_steps, dtype=jnp.int32)
    out2 = jax.block_until_ready(conditional_linear(x2, t2, wt, b, embed_w))
    ref2 = _reference(x2, t2, wt, b, embed_w)
    assert out2.shape == (B2, num_out)
    assert jnp.allclose(out2, ref2, atol=1e-5, rtol=1e-5), "padded-batch mismatch"

    # num_out not a multiple of 128 exercises the N-padding path.
    num_out3 = 96
    w3 = jax.random.uniform(k_w, (num_out3, num_in), jnp.float32, -bound, bound)
    wt3 = w3.T
    b3 = jax.random.uniform(k_b, (num_out3,), jnp.float32, -bound, bound)
    e3 = jax.random.uniform(k_e, (n_steps, num_out3), jnp.float32, 0.0, 1.0)
    out3 = jax.block_until_ready(conditional_linear(x, t, wt3, b3, e3))
    ref3 = _reference(x, t, wt3, b3, e3)
    assert out3.shape == (B, num_out3)
    assert jnp.allclose(out3, ref3, atol=1e-5, rtol=1e-5), "padded-N mismatch"

    # bf16 HBM-traffic path (for large, bandwidth-bound batches); f32 accumulate.
    out_bf16 = jax.block_until_ready(
        conditional_linear(x, t, wt, b, embed_w, compute_dtype=jnp.bfloat16))
    assert out_bf16.shape == (B, num_out)
    assert jnp.allclose(out_bf16.astype(jnp.float32), ref, atol=5e-2, rtol=5e-2), \
        "bf16 mismatch vs reference"

    print("KERNEL_OK")
</pallas_src>

<mosaic_0001>
module attributes {stable_mosaic.version = 11 : i64} {
  func.func @_cond_linear_kernel(%arg0: i32, %arg1: i32, %arg2: memref<8x32xf32, #tpu.memory_space<vmem>>, %arg3: memref<32x128xf32, #tpu.memory_space<vmem>>, %arg4: memref<1x128xf32, #tpu.memory_space<vmem>>, %arg5: memref<10x128xf32, #tpu.memory_space<vmem>>, %arg6: memref<8x1xi32, #tpu.memory_space<vmem>>, %arg7: memref<8x128xf32, #tpu.memory_space<vmem>>) attributes {dimension_semantics = [#tpu.dimension_semantics<parallel>, #tpu.dimension_semantics<parallel>], iteration_bounds = array<i64: 1, 1>, scalar_prefetch = 0 : i64, scratch_operands = 0 : i64, tpu.core_type = #tpu.core_type<tc>, window_params = [{transform_indices = @transform_0, window_bounds = array<i64: 8, 32>}, {transform_indices = @transform_1, window_bounds = array<i64: 32, 128>}, {transform_indices = @transform_2, window_bounds = array<i64: 1, 128>}, {transform_indices = @transform_3, window_bounds = array<i64: 10, 128>}, {transform_indices = @transform_4, window_bounds = array<i64: 8, 1>}, {transform_indices = @transform_5, window_bounds = array<i64: 8, 128>}]} {
    %c0 = arith.constant 0 : index
    %c0_0 = arith.constant 0 : index
    %0 = vector.load %arg2[%c0, %c0_0] : memref<8x32xf32, #tpu.memory_space<vmem>>, vector<8x32xf32>
    %c0_1 = arith.constant 0 : index
    %c0_2 = arith.constant 0 : index
    %1 = vector.load %arg3[%c0_1, %c0_2] : memref<32x128xf32, #tpu.memory_space<vmem>>, vector<32x128xf32>
    %cst = arith.constant dense<0.000000e+00> : vector<8x128xf32>
    %2 = tpu.matmul %0, %1, %cst {dimension_numbers = #tpu.dot_dimension_numbers<[1], [0], [0], [1], [0, 0, 1, 1], [], []>} : vector<8x32xf32>, vector<32x128xf32>, vector<8x128xf32> -> vector<8x128xf32>
    %3 = tpu.iota {dimensions = array<i32: 1>} : vector<8x10xi32>
    %c0_3 = arith.constant 0 : index
    %c0_4 = arith.constant 0 : index
    %4 = vector.load %arg6[%c0_3, %c0_4] : memref<8x1xi32, #tpu.memory_space<vmem>>, vector<8x1xi32>
    %5 = vector.broadcast %4 : vector<8x1xi32> to vector<8x10xi32>
    %6 = arith.cmpi eq, %5, %3 : vector<8x10xi32>
    %7 = arith.extui %6 : vector<8x10xi1> to vector<8x10xi32>
    %8 = arith.sitofp %7 : vector<8x10xi32> to vector<8x10xf32>
    %c0_5 = arith.constant 0 : index
    %c0_6 = arith.constant 0 : index
    %9 = vector.load %arg5[%c0_5, %c0_6] : memref<10x128xf32, #tpu.memory_space<vmem>>, vector<10x128xf32>
    %cst_7 = arith.constant dense<0.000000e+00> : vector<8x128xf32>
    %10 = tpu.matmul %8, %9, %cst_7 {dimension_numbers = #tpu.dot_dimension_numbers<[1], [0], [0], [1], [0, 0, 1, 1], [], []>} : vector<8x10xf32>, vector<10x128xf32>, vector<8x128xf32> -> vector<8x128xf32>
    %c0_8 = arith.constant 0 : index
    %c0_9 = arith.constant 0 : index
    %11 = vector.load %arg4[%c0_8, %c0_9] : memref<1x128xf32, #tpu.memory_space<vmem>>, vector<1x128xf32>
    %12 = vector.broadcast %11 : vector<1x128xf32> to vector<8x128xf32>
    %13 = arith.addf %2, %12 : vector<8x128xf32>
    %14 = arith.mulf %13, %10 : vector<8x128xf32>
    %c0_10 = arith.constant 0 : index
    %c0_11 = arith.constant 0 : index
    %15 = vector.load %arg7[%c0_10, %c0_11] : memref<8x128xf32, #tpu.memory_space<vmem>>, vector<8x128xf32>
    tpu.vector_store %arg7[%c0_10, %c0_11], %14 {strides = array<i32>} : memref<8x128xf32, #tpu.memory_space<vmem>>, vector<8x128xf32>,
    return
  }
  func.func @transform_0(%arg0: i32, %arg1: i32) -> (i32, i32) {
    %c0_i32 = arith.constant 0 : i32
    %c0_i32_0 = arith.constant 0 : i32
    return %arg0, %c0_i32 : i32, i32
  }
  func.func @transform_1(%arg0: i32, %arg1: i32) -> (i32, i32) {
    %c0_i32 = arith.constant 0 : i32
    %c0_i32_0 = arith.constant 0 : i32
    return %c0_i32, %arg1 : i32, i32
  }
  func.func @transform_2(%arg0: i32, %arg1: i32) -> (i32, i32) {
    %c0_i32 = arith.constant 0 : i32
    %c0_i32_0 = arith.constant 0 : i32
    return %c0_i32, %arg1 : i32, i32
  }
  func.func @transform_3(%arg0: i32, %arg1: i32) -> (i32, i32) {
    %c0_i32 = arith.constant 0 : i32
    %c0_i32_0 = arith.constant 0 : i32
    return %c0_i32, %arg1 : i32, i32
  }
  func.func @transform_4(%arg0: i32, %arg1: i32) -> (i32, i32) {
    %c0_i32 = arith.constant 0 : i32
    %c0_i32_0 = arith.constant 0 : i32
    return %arg0, %c0_i32 : i32, i32
  }
  func.func @transform_5(%arg0: i32, %arg1: i32) -> (i32, i32) {
    %c0_i32 = arith.constant 0 : i32
    return %arg0, %arg1 : i32, i32
  }
}

</mosaic_0001>

<llo_original>
// kernel: tpu_custom_call.1
$region0: #{tpu_custom_call.1}
  #allocation0 [shape = 'u32[]', space=smem, size = 0x4, offset = 0x4, fixed_abs, tag = 'smem constant byte address 0x4 - core index']
  #allocation1 [shape = 'u32[144,128]{1,0:T(1,128)}', space=vmem, size = 0x12000, scoped, tag = 'internal scratch']
  %s0 = inlined_call_operand.vmem [shape: f32[8,32], index: 0, kind: input, shape index: {}]
  %s1 = inlined_call_operand.hbm [shape: f32[32,128], index: 1, kind: input, shape index: {}]
  %s2 = inlined_call_operand.vmem [shape: f32[1,128], index: 2, kind: input, shape index: {}]
  %s3 = inlined_call_operand.hbm [shape: f32[10,128], index: 3, kind: input, shape index: {}]
  %s4 = inlined_call_operand.vmem [shape: s32[8,1], index: 4, kind: input, shape index: {}]
  %s5 = inlined_call_operand.hbm [shape: f32[8,128], index: 5, kind: output, shape index: {}]
  %s6 = sld [smem:[#allocation0]]
  $region38: #{tpu_custom_call.1} parent=0
    _
  %s8 = ssub.s32 1, %s6
  %s9 = scalar_select 0, %s8, %s6
  $region1: #{tpu_custom_call.1} parent=0
    #allocation2 [shape = 'u8[16384]{0}', space=vmem, size = 0x4000, scoped, tag = 'input window, operand 1, single buffered']
    #allocation3 [shape = 's32[1]{0}', space=sflag, size = 0x4, scoped, tag = 'scoped memory for tpu_custom_call.1']
    #allocation4 [shape = 's32[1]{0}', space=sflag, size = 0x4, scoped, tag = 'scoped memory for tpu_custom_call.1']
    #allocation5 [shape = 'u8[8192]{0}', space=vmem, size = 0x2000, scoped, tag = 'input window, operand 3, single buffered']
    #allocation6 [shape = 's32[1]{0}', space=sflag, size = 0x4, scoped, tag = 'scoped memory for tpu_custom_call.1']
    #allocation7 [shape = 'u8[4096]{0}', space=vmem, size = 0x1000, scoped, tag = 'output window, operand 0, single buffered']
    %10 = vsyncpa [#allocation3], 0
    %11 = vsyncpa [#allocation6], 0
    %12 = vsyncpa [#allocation4], 0
    // Predicated region
    $region2: #{tpu_custom_call.1} parent=1 // pred_check
      _
    $region3: #{tpu_custom_call.1} parent=1 // pred_check_branch
      %14 = sbr.rel (0) target = $region5
    $region4: #{tpu_custom_call.1} parent=1 // pred_region
      _
    $region5: #{tpu_custom_call.1} parent=1 // pred_fallthru
      _
    // Predicated region
    $region6: #{tpu_custom_call.1} parent=1 // pred_check
      _
    $region7: #{tpu_custom_call.1} parent=1 // pred_check_branch
      %16 = sbr.rel (0) target = $region9
    $region8: #{tpu_custom_call.1} parent=1 // pred_region
      %s18 = ssub.s32 512, 512
      %19 = vsyncadd [#allocation3], %s18
      %s20 = sshll.u32 [#allocation2], 4
      %s21 = int_to_ptr.vmem [resolvable:$true] %s20
      %26 = dma.hbm_to_vmem [thread:$0]  %s1, 512, %s21, [#allocation3], 128, 128, 8
    $region9: #{tpu_custom_call.1} parent=1 // pred_fallthru
      _
    // Predicated region
    $region10: #{tpu_custom_call.1} parent=1 // pred_check
      _
    $region11: #{tpu_custom_call.1} parent=1 // pred_check_branch
      %28 = sbr.rel (0) target = $region13
    $region12: #{tpu_custom_call.1} parent=1 // pred_region
      _
    $region13: #{tpu_custom_call.1} parent=1 // pred_fallthru
      _
    // Predicated region
    $region14: #{tpu_custom_call.1} parent=1 // pred_check
      _
    $region15: #{tpu_custom_call.1} parent=1 // pred_check_branch
      %30 = sbr.rel (0) target = $region17
    $region16: #{tpu_custom_call.1} parent=1 // pred_region
      %s32 = ssub.s32 256, 256
      %33 = vsyncadd [#allocation6], %s32
      %s34 = sshll.u32 [#allocation5], 4
      %s35 = int_to_ptr.vmem [resolvable:$true] %s34
      %40 = dma.hbm_to_vmem [thread:$0]  %s3, 256, %s35, [#allocation6], 128, 128, 8
    $region17: #{tpu_custom_call.1} parent=1 // pred_fallthru
      _
    // Predicated region
    $region18: #{tpu_custom_call.1} parent=1 // pred_check
      _
    $region19: #{tpu_custom_call.1} parent=1 // pred_check_branch
      %42 = sbr.rel (0) target = $region21
    $region20: #{tpu_custom_call.1} parent=1 // pred_region
      _
    $region21: #{tpu_custom_call.1} parent=1 // pred_fallthru
      _
    // Predicated region
    $region22: #{tpu_custom_call.1} parent=1 // pred_check
      _
    $region23: #{tpu_custom_call.1} parent=1 // pred_check_branch
      %44 = sbr.rel (0) target = $region25
    $region24: #{tpu_custom_call.1} parent=1 // pred_region
      %45 = dma.done [#allocation3], 512
    $region25: #{tpu_custom_call.1} parent=1 // pred_fallthru
      _
    // Predicated region
    $region26: #{tpu_custom_call.1} parent=1 // pred_check
      _
    $region27: #{tpu_custom_call.1} parent=1 // pred_check_branch
      %47 = sbr.rel (0) target = $region29
    $region28: #{tpu_custom_call.1} parent=1 // pred_region
      %48 = dma.done [#allocation6], 256
    $region29: #{tpu_custom_call.1} parent=1 // pred_fallthru
      _
    %v49 = vld [vmem:[%s0] sm:$0xff]
    %v50 = vld [vmem:[#allocation2] sm:$0xff]
    %v51 = vld [vmem:[#allocation2 + $0x8] sm:$0xff]
    %v52 = vld [vmem:[#allocation2 + $0x10] sm:$0xff]
    %v53 = vld [vmem:[#allocation2 + $0x18] sm:$0xff]
    %v54 = vlaneseq
    %v55 = vand.u32 %v54, 127
    %v56 = vld [vmem:[%s4] sm:$0xff]
    %57 = vset.pattern.permute.xlu0 0
    %58 = vperm.xlu0 %57, %v56
    %v59 = vpop.permute.xlu0 %58
    %vm60 = vcmp.eq.s32.totalorder %v59, %v55
    %v61 = vsel %vm60, 1, 0
    %v62 = vcvt.s32.f32 %v61
    %v63 = vld [vmem:[#allocation5] sm:$0xff]
    %v64 = vld [vmem:[#allocation5 + $0x8] sm:$0x3]
    %vm65 = vcmask 80896
    %v67 = vsel %vm65, %v62, 0
    %vm69 = vcmask 1041408
    %v71 = vsel %vm69, %v64, 0
    %73 = vmatprep.subr.mxu0 0.0
    %74 = vmatpush1.msra.mxu0 0.0
    %75 = vmatprep.subr.mxu0 0.0
    %76 = vmatpush1.msra.mxu0 0.0
    %77 = vmatprep.subr.mxu0 0.0
    %78 = vmatpush1.msra.mxu0 0.0
    %79 = vmatprep.subr.mxu0 0.0
    %80 = vmatpush1.msra.mxu0 0.0
    %81 = vmatprep.subr.mxu0 0.0
    %82 = vmatpush1.msra.mxu0 0.0
    %83 = vmatprep.subr.mxu0 0.0
    %84 = vmatpush1.msra.mxu0 0.0
    %85 = vmatprep.subr.mxu0 0.0
    %86 = vmatpush1.msra.mxu0 0.0
    %87 = vmatprep.subr.mxu0 0.0
    %88 = vmatpush1.msra.mxu0 0.0
    %89 = vmatprep.subr.mxu0 0.0
    %90 = vmatpush1.msra.mxu0 0.0
    %91 = vmatprep.subr.mxu0 0.0
    %92 = vmatpush1.msra.mxu0 0.0
    %93 = vmatprep.subr.mxu0 0.0
    %94 = vmatpush1.msra.mxu0 0.0
    %95 = vmatprep.subr.mxu0 0.0
    %96 = vmatpush1.msra.mxu0 0.0
    %97 = vmatprep.subr.mxu0 0.0
    %98 = vmatpush1.msra.mxu0 0.0
    %99 = vmatprep.subr.mxu0 0.0
    %100 = vmatpush1.msra.mxu0 0.0
    %101 = vmatprep.subr.mxu0 0.0
    %102 = vmatpush1.msra.mxu0 %v71
    %103 = vmatprep.subr.mxu0 0.0
    %104 = vmatpush1.msra.mxu0 %v63
    %105 = vmatprep.subr.mxu0 0.0
    %106 = vmatpush2.msra.mxu0 0.0
    %107 = vmatprep.subr.mxu0 0.0
    %108 = vmatpush2.msra.mxu0 0.0
    %109 = vmatprep.subr.mxu0 0.0
    %110 = vmatpush2.msra.mxu0 0.0
    %111 = vmatprep.subr.mxu0 0.0
    %112 = vmatpush2.msra.mxu0 0.0
    %113 = vmatprep.subr.mxu0 0.0
    %114 = vmatpush2.msra.mxu0 0.0
    %115 = vmatprep.subr.mxu0 0.0
    %116 = vmatpush2.msra.mxu0 0.0
    %117 = vmatprep.subr.mxu0 0.0
    %118 = vmatpush2.msra.mxu0 0.0
    %119 = vmatprep.subr.mxu0 0.0
    %120 = vmatpush2.msra.mxu0 0.0
    %121 = vmatprep.subr.mxu0 0.0
    %122 = vmatpush2.msra.mxu0 0.0
    %123 = vmatprep.subr.mxu0 0.0
    %124 = vmatpush2.msra.mxu0 0.0
    %125 = vmatprep.subr.mxu0 0.0
    %126 = vmatpush2.msra.mxu0 0.0
    %127 = vmatprep.subr.mxu0 0.0
    %128 = vmatpush2.msra.mxu0 0.0
    %129 = vmatprep.subr.mxu0 0.0
    %130 = vmatpush2.msra.mxu0 0.0
    %131 = vmatprep.subr.mxu0 0.0
    %132 = vmatpush2.msra.mxu0 0.0
    %133 = vmatprep.subr.mxu0 0.0
    %134 = vmatpush2.msra.mxu0 0.0
    %135 = vmatprep.subr.mxu0 0.0
    %136 = vmatpush2.msra.mxu0 0.0
    %137 = vmatprep.mubr.f32.mxu0 0.0
    %138 = vmatmul.mubr.f32.gmra.mxu0 %v67
    %v139 = vpop.f32.mrf.mxu0
    %v140 = vadd.f32 0.0, %v139
    %v141 = vpop.f32.mrf.mxu0
    %142 = vdwg.mxu0
    %v143 = vld [vmem:[%s2] sm:$0x1]
    %v145 = vlaneseq
    %v146 = vshrl.u32 %v145, 7
    %v147 = vsub.s32 0, %v146
    %v148 = vrot.slane %v143, %v147
    %vm150 = vcmask 261120
    %v152 = vsel %vm150, %v49, 0
    %154 = vmatprep.subr.mxu0 0.0
    %155 = vmatpush1.msra.mxu0 0.0
    %156 = vmatprep.subr.mxu0 0.0
    %157 = vmatpush1.msra.mxu0 0.0
    %158 = vmatprep.subr.mxu0 0.0
    %159 = vmatpush1.msra.mxu0 0.0
    %160 = vmatprep.subr.mxu0 0.0
    %161 = vmatpush1.msra.mxu0 0.0
    %162 = vmatprep.subr.mxu0 0.0
    %163 = vmatpush1.msra.mxu0 0.0
    %164 = vmatprep.subr.mxu0 0.0
    %165 = vmatpush1.msra.mxu0 0.0
    %166 = vmatprep.subr.mxu0 0.0
    %167 = vmatpush1.msra.mxu0 0.0
    %168 = vmatprep.subr.mxu0 0.0
    %169 = vmatpush1.msra.mxu0 0.0
    %170 = vmatprep.subr.mxu0 0.0
    %171 = vmatpush1.msra.mxu0 0.0
    %172 = vmatprep.subr.mxu0 0.0
    %173 = vmatpush1.msra.mxu0 0.0
    %174 = vmatprep.subr.mxu0 0.0
    %175 = vmatpush1.msra.mxu0 0.0
    %176 = vmatprep.subr.mxu0 0.0
    %177 = vmatpush1.msra.mxu0 0.0
    %178 = vmatprep.subr.mxu0 0.0
    %179 = vmatpush1.msra.mxu0 %v53
    %180 = vmatprep.subr.mxu0 0.0
    %181 = vmatpush1.msra.mxu0 %v52
    %182 = vmatprep.subr.mxu0 0.0
    %183 = vmatpush1.msra.mxu0 %v51
    %184 = vmatprep.subr.mxu0 0.0
    %185 = vmatpush1.msra.mxu0 %v50
    %186 = vmatprep.subr.mxu0 0.0
    %187 = vmatpush2.msra.mxu0 0.0
    %188 = vmatprep.subr.mxu0 0.0
    %189 = vmatpush2.msra.mxu0 0.0
    %190 = vmatprep.subr.mxu0 0.0
    %191 = vmatpush2.msra.mxu0 0.0
    %192 = vmatprep.subr.mxu0 0.0
    %193 = vmatpush2.msra.mxu0 0.0
    %194 = vmatprep.subr.mxu0 0.0
    %195 = vmatpush2.msra.mxu0 0.0
    %196 = vmatprep.subr.mxu0 0.0
    %197 = vmatpush2.msra.mxu0 0.0
    %198 = vmatprep.subr.mxu0 0.0
    %199 = vmatpush2.msra.mxu0 0.0
    %200 = vmatprep.subr.mxu0 0.0
    %201 = vmatpush2.msra.mxu0 0.0
    %202 = vmatprep.subr.mxu0 0.0
    %203 = vmatpush2.msra.mxu0 0.0
    %204 = vmatprep.subr.mxu0 0.0
    %205 = vmatpush2.msra.mxu0 0.0
    %206 = vmatprep.subr.mxu0 0.0
    %207 = vmatpush2.msra.mxu0 0.0
    %208 = vmatprep.subr.mxu0 0.0
    %209 = vmatpush2.msra.mxu0 0.0
    %210 = vmatprep.subr.mxu0 0.0
    %211 = vmatpush2.msra.mxu0 0.0
    %212 = vmatprep.subr.mxu0 0.0
    %213 = vmatpush2.msra.mxu0 0.0
    %214 = vmatprep.subr.mxu0 0.0
    %215 = vmatpush2.msra.mxu0 0.0
    %216 = vmatprep.subr.mxu0 0.0
    %217 = vmatpush2.msra.mxu0 0.0
    %218 = vmatprep.mubr.f32.mxu0 0.0
    %219 = vmatmul.mubr.f32.gmra.mxu0 %v152
    %v220 = vpop.f32.mrf.mxu0
    %v221 = vadd.f32 %v148, %v220
    %v222 = vpop.f32.mrf.mxu0
    %223 = vdwg.mxu0
    %v224 = vmul.f32 %v221, %v140
    %225 = vst [vmem:[#allocation7] sm:$0xff] %v224
    // Predicated region
    $region30: #{tpu_custom_call.1} parent=1 // pred_check
      _
    $region31: #{tpu_custom_call.1} parent=1 // pred_check_branch
      %227 = sbr.rel (0) target = $region33
    $region32: #{tpu_custom_call.1} parent=1 // pred_region
      %s229 = ssub.s32 128, 128
      %230 = vsyncadd [#allocation4], %s229
      %s232 = sshll.u32 [#allocation7], 4
      %s233 = int_to_ptr.vmem [resolvable:$true] %s232
      %235 = dma.vmem_to_hbm [thread:$0]  %s233, 128, %s5, [#allocation4]
    $region33: #{tpu_custom_call.1} parent=1 // pred_fallthru
      _
    // Predicated region
    $region34: #{tpu_custom_call.1} parent=1 // pred_check
      _
    $region35: #{tpu_custom_call.1} parent=1 // pred_check_branch
      %237 = sbr.rel (0) target = $region37
    $region36: #{tpu_custom_call.1} parent=1 // pred_region
      %238 = dma.done [#allocation4], 128
    $region37: #{tpu_custom_call.1} parent=1 // pred_fallthru
      _
    %239 = vsyncpa [#allocation3], 1
    %240 = vsyncpa [#allocation6], 1
    %241 = vsyncpa [#allocation4], 1

</llo_original>
